<compile_context>
chip_gen: v5e
topology: v5e:2x2
jax: 0.10.0
libtpu: 0.0.40
codegen_flags: <defaults>
</compile_context>

<pallas_src>
import functools

import jax
import jax.numpy as jnp
from jax.experimental import pallas as pl
from jax.experimental.pallas import tpu as pltpu


def _head_dnn_kernel(f_ref, w_ref, o_ref):
    # f_ref: (TB, N*inDim)        lane-dense packed feature rows for one head
    # w_ref: (N*inDim, N*outDim)  N-block-diagonal weight for this head (VMEM-resident)
    # o_ref: (TB, N*outDim)       lane-dense packed output rows
    x = f_ref[...]
    w = w_ref[...]
    y = jnp.dot(x, w, preferred_element_type=jnp.float32)   # single MXU matmul
    o_ref[...] = jnp.maximum(y, 0.0).astype(o_ref.dtype)    # ReLU in f32, cast on store


@functools.partial(jax.jit, static_argnames=("batch_tile", "compute_dtype"))
def head_dnn(feature: jax.Array, para: jax.Array, *,
             batch_tile: int = 1024, compute_dtype=None) -> jax.Array:
    """relu(feature @ para), broadcasting para's leading batch dim.

    feature: (B, head, N, inDim)
    para:    (1, head, inDim, outDim)
    returns: (B, head, N, outDim), dtype == feature.dtype

    compute_dtype: optional operand dtype for the matmul (e.g. jnp.bfloat16 on
    v6e/v7x). Accumulation is always f32.
    """
    B, H, N, inDim = feature.shape
    _, Hp, inDim_p, outDim = para.shape
    assert Hp == H and inDim_p == inDim

    out_dtype = feature.dtype
    cdt = compute_dtype if compute_dtype is not None else feature.dtype

    K = N * inDim    # packed contraction width (256 for N=8, inDim=32)
    O = N * outDim   # packed output width      (256 for N=8, outDim=32)

    # Pack the N rows of each (b, h) into one lane-dense row.  Contiguous-dim
    # reshape + dummy size-1 dim => free (no transpose, no data movement).
    f_packed = feature.astype(cdt).reshape(B, H, 1, K)

    # Per-head N-block-diagonal weight: W_bd[h, n*inDim + k, m*outDim + o]
    #   = (n == m) * para[0, h, k, o].  Tiny (H * K * O elements).
    w = para[0].astype(cdt)                      # (H, inDim, outDim)
    eye = jnp.eye(N, dtype=cdt)                  # (N, N)
    w_bd = jnp.einsum("nm,hko->hnkmo", eye, w).reshape(H, K, O)

    TB = min(batch_tile, B)
    grid = (H, pl.cdiv(B, TB))                   # head OUTER, batch tile INNER

    out_packed = pl.pallas_call(
        _head_dnn_kernel,
        out_shape=jax.ShapeDtypeStruct((B, H, 1, O), out_dtype),
        grid=grid,
        in_specs=[
            # Feature tile: TB packed rows of the current head.  Head / dummy
            # dims are squeezed so the kernel ref is 2-D (TB, K).
            pl.BlockSpec((TB, None, None, K), lambda h, bt: (bt, h, 0, 0)),
            # Per-head block-diag weight: block index constant across the inner
            # batch axis => DMA'd once per head, stays resident in VMEM.
            pl.BlockSpec((None, K, O), lambda h, bt: (h, 0, 0)),
        ],
        out_specs=pl.BlockSpec((TB, None, None, O), lambda h, bt: (bt, h, 0, 0)),
        compiler_params=pltpu.CompilerParams(
            # Batch-tile axis parallel so v7x's 2 TensorCores can shard it;
            # neutral on single-TC v5e/v6e.
            dimension_semantics=("arbitrary", "parallel"),
        ),
    )(f_packed, w_bd)

    # Free reshape back to the PyTorch layout (no transpose).
    return out_packed.reshape(B, H, N, outDim)


def head_dnn_reference(feature, para):
    # Pure-JAX reference of the PyTorch forward.
    return jnp.maximum(jnp.matmul(feature, para), 0.0)


if __name__ == "__main__":
    # Small shapes consistent with the module: head=4, inDim=32, outDim=32,
    # batch=2, N=8 feature rows per head.
    B, HEAD, N, IN_DIM, OUT_DIM = 2, 4, 8, 32, 32

    key = jax.random.PRNGKey(0)
    k_feat, k_par = jax.random.split(key)

    feature = jax.random.normal(k_feat, (B, HEAD, N, IN_DIM), dtype=jnp.float32)
    # nn.init.normal(mean=0, std=0.01) on a (1, head, inDim, outDim) parameter
    para = 0.01 * jax.random.normal(
        k_par, (1, HEAD, IN_DIM, OUT_DIM), dtype=jnp.float32
    )

    ref = head_dnn_reference(feature, para)

    # f32 compute path: strict parity with the fp32 PyTorch reference.
    out = jax.block_until_ready(head_dnn(feature, para))
    assert out.shape == (B, HEAD, N, OUT_DIM)
    assert out.dtype == feature.dtype
    assert jnp.allclose(out, ref, atol=1e-5, rtol=1e-5)

    # bf16 compute path (recommended on v6e/v7x): relaxed tolerance.
    out_bf16 = jax.block_until_ready(
        head_dnn(feature, para, compute_dtype=jnp.bfloat16)
    )
    assert out_bf16.shape == (B, HEAD, N, OUT_DIM)
    assert jnp.allclose(out_bf16, ref, atol=1e-2, rtol=1e-1)

    print("KERNEL_OK")
</pallas_src>

<mosaic_0001>
module attributes {stable_mosaic.version = 11 : i64} {
  func.func @_head_dnn_kernel(%arg0: i32, %arg1: i32, %arg2: memref<2x1x1x256xf32, #tpu.memory_space<vmem>>, %arg3: memref<1x256x256xf32, #tpu.memory_space<vmem>>, %arg4: memref<2x1x1x256xf32, #tpu.memory_space<vmem>>) attributes {dimension_semantics = [#tpu.dimension_semantics<arbitrary>, #tpu.dimension_semantics<parallel>], iteration_bounds = array<i64: 4, 1>, scalar_prefetch = 0 : i64, scratch_operands = 0 : i64, tpu.core_type = #tpu.core_type<tc>, window_params = [{transform_indices = @transform_0, window_bounds = array<i64: 2, 1, 1, 256>}, {transform_indices = @transform_1, window_bounds = array<i64: 1, 256, 256>}, {transform_indices = @transform_2, window_bounds = array<i64: 2, 1, 1, 256>}]} {
    %c0 = arith.constant 0 : index
    %c0_0 = arith.constant 0 : index
    %c0_1 = arith.constant 0 : index
    %c0_2 = arith.constant 0 : index
    %0 = vector.load %arg2[%c0, %c0_0, %c0_1, %c0_2] : memref<2x1x1x256xf32, #tpu.memory_space<vmem>>, vector<2x1x1x256xf32>
    %1 = vector.shape_cast %0 : vector<2x1x1x256xf32> to vector<2x256xf32>
    %c0_3 = arith.constant 0 : index
    %c0_4 = arith.constant 0 : index
    %c0_5 = arith.constant 0 : index
    %2 = vector.load %arg3[%c0_3, %c0_4, %c0_5] : memref<1x256x256xf32, #tpu.memory_space<vmem>>, vector<1x256x256xf32>
    %3 = vector.shape_cast %2 : vector<1x256x256xf32> to vector<256x256xf32>
    %cst = arith.constant dense<0.000000e+00> : vector<2x256xf32>
    %4 = tpu.matmul %1, %3, %cst {dimension_numbers = #tpu.dot_dimension_numbers<[1], [0], [0], [1], [0, 0, 1, 1], [], []>} : vector<2x256xf32>, vector<256x256xf32>, vector<2x256xf32> -> vector<2x256xf32>
    %cst_6 = arith.constant 0.000000e+00 : f32
    %5 = vector.broadcast %cst_6 : f32 to vector<2x256xf32>
    %6 = arith.maximumf %4, %5 : vector<2x256xf32>
    %c0_7 = arith.constant 0 : index
    %c0_8 = arith.constant 0 : index
    %c0_9 = arith.constant 0 : index
    %c0_10 = arith.constant 0 : index
    %7 = vector.load %arg4[%c0_7, %c0_8, %c0_9, %c0_10] : memref<2x1x1x256xf32, #tpu.memory_space<vmem>>, vector<2x1x1x256xf32>
    %8 = vector.shape_cast %7 : vector<2x1x1x256xf32> to vector<2x256xf32>
    %9 = vector.shape_cast %6 : vector<2x256xf32> to vector<2x1x1x256xf32>
    tpu.vector_store %arg4[%c0_7, %c0_8, %c0_9, %c0_10], %9 {strides = array<i32>} : memref<2x1x1x256xf32, #tpu.memory_space<vmem>>, vector<2x1x1x256xf32>,
    return
  }
  func.func @transform_0(%arg0: i32, %arg1: i32) -> (i32, i32, i32, i32) {
    %c0_i32 = arith.constant 0 : i32
    %c0_i32_0 = arith.constant 0 : i32
    %c0_i32_1 = arith.constant 0 : i32
    return %arg1, %arg0, %c0_i32, %c0_i32_0 : i32, i32, i32, i32
  }
  func.func @transform_1(%arg0: i32, %arg1: i32) -> (i32, i32, i32) {
    %c0_i32 = arith.constant 0 : i32
    %c0_i32_0 = arith.constant 0 : i32
    %c0_i32_1 = arith.constant 0 : i32
    return %arg0, %c0_i32, %c0_i32_0 : i32, i32, i32
  }
  func.func @transform_2(%arg0: i32, %arg1: i32) -> (i32, i32, i32, i32) {
    %c0_i32 = arith.constant 0 : i32
    %c0_i32_0 = arith.constant 0 : i32
    %c0_i32_1 = arith.constant 0 : i32
    return %arg1, %arg0, %c0_i32, %c0_i32_0 : i32, i32, i32, i32
  }
}

</mosaic_0001>

<llo_original>
// kernel: head_dnn.1
$region0: #{head_dnn.1}
  #allocation0 [shape = 'u32[]', space=smem, size = 0x4, offset = 0x4, fixed_abs, tag = 'smem constant byte address 0x4 - core index']
  #allocation1 [shape = 'u32[72,128]{1,0:T(1,128)}', space=vmem, size = 0x9000, scoped, tag = 'internal scratch']
  %s0 = inlined_call_operand.vmem [shape: f32[2,4,1,256], index: 0, kind: input, shape index: {}]
  %s1 = inlined_call_operand.vmem [shape: f32[4,256,256], index: 1, kind: input, shape index: {}]
  %s2 = inlined_call_operand.vmem [shape: f32[2,4,1,256], index: 2, kind: output, shape index: {}]
  %s3 = sld [smem:[#allocation0]]
  $region105: #{head_dnn.1} parent=0
    _
  %s5 = ssub.s32 1, %s3
  %s6 = scalar_select 0, %s5, %s3
  $region1: #{head_dnn.1} parent=0
    #allocation2 [shape = 'u8[4096]{0}', space=vmem, size = 0x1000, scoped, tag = 'input window, operand 0']
    #allocation3 [shape = 'u8[4096]{0}', space=vmem, size = 0x1000, scoped, tag = 'output window, operand 0']
    loop: start=0, step=1, limit=6
    $region2: #{head_dnn.1} parent=1 // loop_pre_header
      _
    $region3: #{head_dnn.1} parent=1 // loop_header
      %s8 = sphi 0, %s12
      %p9 = scmp.ge.s32.totalorder %s8, 6
      %s15 = sphi 0, %s27
      %s16 = sphi 0, %s23
      %s17 = sphi 0, %s15
      %s18 = sphi 0, %s16
      %s19 = sphi 0, %s17
      %s20 = sphi 0, %s18
      %s32 = sphi 0, %s34
      %s35 = sphi 0, %s32
      %s36 = sphi 0, %s35
      %s52 = sphi 0, %s36
      %s58 = sphi 0, %s60
      %s61 = sphi 0, %s58
      %s62 = sphi 0, %s61
      %s78 = sphi 0, %s62
      %s86 = sphi 0, %s88
      %s89 = sphi 0, %s86
      %s90 = sphi 0, %s89
      %s106 = sphi 0, %s90
    $region4: #{head_dnn.1} parent=1 // loop_header_branch
      %11 = sbr.rel (%p9) target = $region8
    $region5: #{head_dnn.1} parent=1 // loop_body
      %s13 = ssub.s32 %s8, 1
      %s14 = ssub.s32 %s8, 2
      %s21 = sadd.s32 1, %s16
      %p22 = scmp.ge.s32.totalorder %s21, 1
      %s23 = scalar_select %p22, 0, %s21
      %s24 = sadd.s32 1, %s15
      %s25 = scalar_select %p22, %s24, %s15
      %p26 = scmp.ge.s32.totalorder %s25, 4
      %s27 = scalar_select %p26, 0, %s25
      %s28 = ssub.s32 %s16, %s23
      %s29 = ssub.s32 %s15, %s27
      %s30 = sor.u32 %s28, %s29
      %p31 = scmp.eq.s32.totalorder %s30, 0
      %s33 = sadd.s32 %s32, 1
      %s34 = scalar_select %p31, %s32, %s33
      %p37 = pneg %p31
      %p38 = scmp.eq.s32.totalorder %s8, 3
      %p39 = por %p37, %p38
      %p40 = scmp.ne.s32.totalorder %s32, %s35
      %p41 = scmp.eq.s32.totalorder %s8, 0
      %p42 = por %p40, %p41
      %p43 = scmp.ne.s32.totalorder %s32, %s35
      %p44 = scmp.eq.s32.totalorder %s13, 3
      %p45 = por %p43, %p44
      %p46 = scmp.ne.s32.totalorder %s35, %s36
      %p47 = scmp.eq.s32.totalorder %s13, 0
      %p48 = por %p46, %p47
      %p49 = scmp.ne.s32.totalorder %s35, %s36
      %p50 = scmp.eq.s32.totalorder %s14, 3
      %p51 = por %p49, %p50
      %p53 = scmp.ne.s32.totalorder %s36, %s52
      %p54 = scmp.eq.s32.totalorder %s14, 0
      %p55 = por %p53, %p54
      %s56 = ssub.s32 %s15, %s27
      %p57 = scmp.eq.s32.totalorder %s56, 0
      %s59 = sadd.s32 %s58, 1
      %s60 = scalar_select %p57, %s58, %s59
      %p63 = pneg %p57
      %p64 = scmp.eq.s32.totalorder %s8, 3
      %p65 = por %p63, %p64
      %p66 = scmp.ne.s32.totalorder %s58, %s61
      %p67 = scmp.eq.s32.totalorder %s8, 0
      %p68 = por %p66, %p67
      %p69 = scmp.ne.s32.totalorder %s58, %s61
      %p70 = scmp.eq.s32.totalorder %s13, 3
      %p71 = por %p69, %p70
      %p72 = scmp.ne.s32.totalorder %s61, %s62
      %p73 = scmp.eq.s32.totalorder %s13, 0
      %p74 = por %p72, %p73
      %p75 = scmp.ne.s32.totalorder %s61, %s62
      %p76 = scmp.eq.s32.totalorder %s14, 3
      %p77 = por %p75, %p76
      %p79 = scmp.ne.s32.totalorder %s62, %s78
      %p80 = scmp.eq.s32.totalorder %s14, 0
      %p81 = por %p79, %p80
      %s82 = ssub.s32 %s16, %s23
      %s83 = ssub.s32 %s15, %s27
      %s84 = sor.u32 %s82, %s83
      %p85 = scmp.eq.s32.totalorder %s84, 0
      %s87 = sadd.s32 %s86, 1
      %s88 = scalar_select %p85, %s86, %s87
      %p91 = pneg %p85
      %p92 = scmp.eq.s32.totalorder %s8, 3
      %p93 = por %p91, %p92
      %p94 = scmp.ne.s32.totalorder %s86, %s89
      %p95 = scmp.eq.s32.totalorder %s8, 0
      %p96 = por %p94, %p95
      %p97 = scmp.ne.s32.totalorder %s86, %s89
      %p98 = scmp.eq.s32.totalorder %s13, 3
      %p99 = por %p97, %p98
      %p100 = scmp.ne.s32.totalorder %s89, %s90
      %p101 = scmp.eq.s32.totalorder %s13, 0
      %p102 = por %p100, %p101
      %p103 = scmp.ne.s32.totalorder %s89, %s90
      %p104 = scmp.eq.s32.totalorder %s14, 3
      %p105 = por %p103, %p104
      %p107 = scmp.ne.s32.totalorder %s90, %s106
      %p108 = scmp.eq.s32.totalorder %s14, 0
      %p109 = por %p107, %p108
      %p110 = scmp.le.s32.totalorder 1, %s8
      %p111 = scmp.lt.s32.totalorder %s8, 5
      %p112 = pnand %p110, %p111
      %p113 = pneg %p112
      // Predicated region
      $region9: #{head_dnn.1} parent=5 // pred_check
        _
      $region10: #{head_dnn.1} parent=5 // pred_check_branch
        %115 = sbr.rel (%p112) target = $region12
      $region11: #{head_dnn.1} parent=5 // pred_region
        %s116 = ssub.s32 %s8, 1
      $region12: #{head_dnn.1} parent=5 // pred_fallthru
        _
      %p117 = scmp.lt.s32.totalorder %s8, 4
      // Predicated region
      $region13: #{head_dnn.1} parent=5 // pred_check
        %p118 = pneg %p117
      $region14: #{head_dnn.1} parent=5 // pred_check_branch
        %120 = sbr.rel (%p118) target = $region16
      $region15: #{head_dnn.1} parent=5 // pred_region
        // Predicated region
        $region17: #{head_dnn.1} parent=15 // pred_check
          %p121 = pneg %p42
        $region18: #{head_dnn.1} parent=15 // pred_check_branch
          %123 = sbr.rel (%p121) target = $region20
        $region19: #{head_dnn.1} parent=15 // pred_region
          %s124 = sand.u32 %s32, 1
          %s125 = sand.u32 %s32, 1
          %s126 = smul.addr %s125, 4
          %s127 = scalar_lea.vmem [#allocation2], %s126
          %s128 = smul.u32 2, %s16
          %s129 = smul.addr %s15, 2
          %s130 = smul.addr %s128, 8
          %s131 = sadd.s32 %s129, %s130
          %s132 = scalar_lea.vmem %s0, %s131
          // Predicated region
          $region21: #{head_dnn.1} parent=19 // pred_check
            _
          $region22: #{head_dnn.1} parent=19 // pred_check_branch
            %134 = sbr.rel (0) target = $region24
          $region23: #{head_dnn.1} parent=19 // pred_region
            // Predicated region
            $region25: #{head_dnn.1} parent=23 // pred_check
              _
            $region26: #{head_dnn.1} parent=23 // pred_check_branch
              %136 = sbr.rel target = $region28
            $region27: #{head_dnn.1} parent=23 // pred_region
              // Predicated region
              $region40: #{head_dnn.1} parent=27 // pred_check
                _
              $region41: #{head_dnn.1} parent=27 // pred_check_branch
                %154 = sbr.rel (0) target = $region43
              $region42: #{head_dnn.1} parent=27 // pred_region
                %s156 = ssub.s32 4, 1
                loop: start=0, step=1, limit=1
                $region44: #{head_dnn.1} parent=42 // loop_pre_header
                  _
                $region45: #{head_dnn.1} parent=42 // loop_header
                  %s158 = sphi 0, %s162
                  %p159 = scmp.ge.s32.totalorder %s158, 1
                  %s163 = sphi %s132, %s132
                  %s164 = sphi %s127, %s127
                $region46: #{head_dnn.1} parent=42 // loop_header_branch
                  %161 = sbr.rel (%p159) target = $region50
                $region47: #{head_dnn.1} parent=42 // loop_body
                  %v165 = vld [vmem:[%s163] sm:%s156]
                  %166 = vst [vmem:[%s164] sm:%s156] %v165
                  %v167 = vld [vmem:[%s163 + $0x8] sm:%s156]
                  %168 = vst [vmem:[%s164 + $0x2] sm:%s156] %v167
                $region48: #{head_dnn.1} parent=42 // loop_footer
                  %s162 = sadd.s32 1, %s158
                $region49: #{head_dnn.1} parent=42 // loop_footer_branch
                  %157 = sbr.rel target = $region45
                $region50: #{head_dnn.1} parent=42 // loop_exit
                  _
              $region43: #{head_dnn.1} parent=27 // pred_fallthru
                _
            $region28: #{head_dnn.1} parent=23 // pred_fallthru
              _
            // Predicated region
            $region29: #{head_dnn.1} parent=23 // pred_check
              _
            $region30: #{head_dnn.1} parent=23 // pred_check_branch
              %138 = sbr.rel (0) target = $region32
            $region31: #{head_dnn.1} parent=23 // pred_region
              %s140 = ssub.s32 4, 1
              loop: start=0, step=1, limit=1
              $region33: #{head_dnn.1} parent=31 // loop_pre_header
                _
              $region34: #{head_dnn.1} parent=31 // loop_header
                %s142 = sphi 0, %s146
                %p143 = scmp.ge.s32.totalorder %s142, 1
                %s147 = sphi %s132, %s132
                %s148 = sphi %s127, %s127
              $region35: #{head_dnn.1} parent=31 // loop_header_branch
                %145 = sbr.rel (%p143) target = $region39
              $region36: #{head_dnn.1} parent=31 // loop_body
                %v149 = vld [vmem:[%s147] sm:%s140]
                %150 = vst [vmem:[%s148] sm:%s140] %v149
                %v151 = vld [vmem:[%s147 + $0x8] sm:%s140]
                %152 = vst [vmem:[%s148 + $0x2] sm:%s140] %v151
              $region37: #{head_dnn.1} parent=31 // loop_footer
                %s146 = sadd.s32 1, %s142
              $region38: #{head_dnn.1} parent=31 // loop_footer_branch
                %141 = sbr.rel target = $region34
              $region39: #{head_dnn.1} parent=31 // loop_exit
                _
            $region32: #{head_dnn.1} parent=23 // pred_fallthru
              _
          $region24: #{head_dnn.1} parent=19 // pred_fallthru
            _
          %169 = vnop
        $region20: #{head_dnn.1} parent=15 // pred_fallthru
          _
        // Predicated region
        $region51: #{head_dnn.1} parent=15 // pred_check
          %p170 = pneg %p68
        $region52: #{head_dnn.1} parent=15 // pred_check_branch
          %172 = sbr.rel (%p170) target = $region54
        $region53: #{head_dnn.1} parent=15 // pred_region
          %p173 = scmp.lt.s32.totalorder %s15, 3
          %s174 = scalar_select %p173, %s15, 3
          %s175 = smul.addr %s174, 64
          %s176 = smul.addr %s175, 8
          %s177 = scalar_lea.vmem %s1, %s176
        $region54: #{head_dnn.1} parent=15 // pred_fallthru
          _
      $region16: #{head_dnn.1} parent=5 // pred_fallthru
        _
      %p178 = scmp.le.s32.totalorder 1, %s8
      %p179 = scmp.lt.s32.totalorder %s8, 5
      %p180 = pnand %p178, %p179
      %p181 = pneg %p180
      // Predicated region
      $region55: #{head_dnn.1} parent=5 // pred_check
        _
      $region56: #{head_dnn.1} parent=5 // pred_check_branch
        %183 = sbr.rel (%p180) target = $region58
      $region57: #{head_dnn.1} parent=5 // pred_region
        %s184 = ssub.s32 %s8, 1
        %s185 = sand.u32 %s35, 1
        %s186 = sand.u32 %s35, 1
        %s187 = smul.addr %s186, 4
        %s188 = scalar_lea.vmem [#allocation2], %s187
        // Predicated region
        $region59: #{head_dnn.1} parent=57 // pred_check
          %p189 = pneg %p48
        $region60: #{head_dnn.1} parent=57 // pred_check_branch
          %191 = sbr.rel (%p189) target = $region62
        $region61: #{head_dnn.1} parent=57 // pred_region
          _
        $region62: #{head_dnn.1} parent=57 // pred_fallthru
          _
        %s192 = sand.u32 %s35, 1
        %s193 = sand.u32 %s35, 1
        %s194 = smul.addr %s193, 4
        %s195 = scalar_lea.vmem [#allocation2], %s194
        %p196 = pneg %p48
        %p197 = pneg %p45
        %p198 = scmp.lt.s32.totalorder %s17, 3
        %s199 = scalar_select %p198, %s17, 3
        %s200 = smul.addr %s199, 64
        %s201 = smul.addr %s200, 8
        %s202 = scalar_lea.vmem %s1, %s201
        %p203 = pneg %p74
        %p204 = pneg %p71
        %p205 = pneg %p102
        %p206 = pneg %p99
        %s207 = sand.u32 %s89, 1
        %s208 = sand.u32 %s89, 1
        %s209 = smul.addr %s208, 4
        %s210 = scalar_lea.vmem [#allocation3], %s209
        %s211 = smul.u32 2, %s18
        %p212 = scmp.lt.s32.totalorder %s17, 3
        %s213 = scalar_select %p212, %s17, 3
        %s214 = smul.addr %s213, 64
        %s215 = smul.addr %s214, 8
        %s216 = scalar_lea.vmem %s1, %s215
        %s217 = smul.u32 2, %s18
        %v218 = vld [vmem:[%s188] sm:$0x3]
        %v219 = vld [vmem:[%s188 + $0x2] sm:$0x3]
        %v220 = vld [vmem:[%s216] sm:$0xff]
        %v221 = vld [vmem:[%s216 + $0x8] sm:$0xff]
        %v222 = vld [vmem:[%s216 + $0x10] sm:$0xff]
        %v223 = vld [vmem:[%s216 + $0x18] sm:$0xff]
        %v224 = vld [vmem:[%s216 + $0x20] sm:$0xff]
        %v225 = vld [vmem:[%s216 + $0x28] sm:$0xff]
        %v226 = vld [vmem:[%s216 + $0x30] sm:$0xff]
        %v227 = vld [vmem:[%s216 + $0x38] sm:$0xff]
        %v228 = vld [vmem:[%s216 + $0x40] sm:$0xff]
        %v229 = vld [vmem:[%s216 + $0x48] sm:$0xff]
        %v230 = vld [vmem:[%s216 + $0x50] sm:$0xff]
        %v231 = vld [vmem:[%s216 + $0x58] sm:$0xff]
        %v232 = vld [vmem:[%s216 + $0x60] sm:$0xff]
        %v233 = vld [vmem:[%s216 + $0x68] sm:$0xff]
        %v234 = vld [vmem:[%s216 + $0x70] sm:$0xff]
        %v235 = vld [vmem:[%s216 + $0x78] sm:$0xff]
        %v236 = vld [vmem:[%s216 + $0x80] sm:$0xff]
        %v237 = vld [vmem:[%s216 + $0x88] sm:$0xff]
        %v238 = vld [vmem:[%s216 + $0x90] sm:$0xff]
        %v239 = vld [vmem:[%s216 + $0x98] sm:$0xff]
        %v240 = vld [vmem:[%s216 + $0xa0] sm:$0xff]
        %v241 = vld [vmem:[%s216 + $0xa8] sm:$0xff]
        %v242 = vld [vmem:[%s216 + $0xb0] sm:$0xff]
        %v243 = vld [vmem:[%s216 + $0xb8] sm:$0xff]
        %v244 = vld [vmem:[%s216 + $0xc0] sm:$0xff]
        %v245 = vld [vmem:[%s216 + $0xc8] sm:$0xff]
        %v246 = vld [vmem:[%s216 + $0xd0] sm:$0xff]
        %v247 = vld [vmem:[%s216 + $0xd8] sm:$0xff]
        %v248 = vld [vmem:[%s216 + $0xe0] sm:$0xff]
        %v249 = vld [vmem:[%s216 + $0xe8] sm:$0xff]
        %v250 = vld [vmem:[%s216 + $0xf0] sm:$0xff]
        %v251 = vld [vmem:[%s216 + $0xf8] sm:$0xff]
        %v252 = vld [vmem:[%s216 + $0x100] sm:$0xff]
        %v253 = vld [vmem:[%s216 + $0x108] sm:$0xff]
        %v254 = vld [vmem:[%s216 + $0x110] sm:$0xff]
        %v255 = vld [vmem:[%s216 + $0x118] sm:$0xff]
        %v256 = vld [vmem:[%s216 + $0x120] sm:$0xff]
        %v257 = vld [vmem:[%s216 + $0x128] sm:$0xff]
        %v258 = vld [vmem:[%s216 + $0x130] sm:$0xff]
        %v259 = vld [vmem:[%s216 + $0x138] sm:$0xff]
        %v260 = vld [vmem:[%s216 + $0x140] sm:$0xff]
        %v261 = vld [vmem:[%s216 + $0x148] sm:$0xff]
        %v262 = vld [vmem:[%s216 + $0x150] sm:$0xff]
        %v263 = vld [vmem:[%s216 + $0x158] sm:$0xff]
        %v264 = vld [vmem:[%s216 + $0x160] sm:$0xff]
        %v265 = vld [vmem:[%s216 + $0x168] sm:$0xff]
        %v266 = vld [vmem:[%s216 + $0x170] sm:$0xff]
        %v267 = vld [vmem:[%s216 + $0x178] sm:$0xff]
        %v268 = vld [vmem:[%s216 + $0x180] sm:$0xff]
        %v269 = vld [vmem:[%s216 + $0x188] sm:$0xff]
        %v270 = vld [vmem:[%s216 + $0x190] sm:$0xff]
        %v271 = vld [vmem:[%s216 + $0x198] sm:$0xff]
        %v272 = vld [vmem:[%s216 + $0x1a0] sm:$0xff]
        %v273 = vld [vmem:[%s216 + $0x1a8] sm:$0xff]
        %v274 = vld [vmem:[%s216 + $0x1b0] sm:$0xff]
        %v275 = vld [vmem:[%s216 + $0x1b8] sm:$0xff]
        %v276 = vld [vmem:[%s216 + $0x1c0] sm:$0xff]
        %v277 = vld [vmem:[%s216 + $0x1c8] sm:$0xff]
        %v278 = vld [vmem:[%s216 + $0x1d0] sm:$0xff]
        %v279 = vld [vmem:[%s216 + $0x1d8] sm:$0xff]
        %v280 = vld [vmem:[%s216 + $0x1e0] sm:$0xff]
        %v281 = vld [vmem:[%s216 + $0x1e8] sm:$0xff]
        %v282 = vld [vmem:[%s216 + $0x1f0] sm:$0xff]
        %v283 = vld [vmem:[%s216 + $0x1f8] sm:$0xff]
        %286 = vst [vmem:[#allocation1] ss:$9 sm:$0xff] %v218
        %s287 = scalar_lea.vmem [#allocation1], 1
        %288 = vst [vmem:[%s287] ss:$9 sm:$0xff] %v219
        %v289 = vld [vmem:[#allocation1] sm:$0xff]
        %v290 = vld [vmem:[#allocation1 + $0x9] sm:$0xff]
        %293 = vmatpush.msra.mxu0 %v250
        %294 = vmatpush.msra.mxu0 %v248
        %295 = vmatpush.msra.mxu0 %v246
        %296 = vmatpush.msra.mxu0 %v244
        %297 = vmatpush.msra.mxu0 %v242
        %298 = vmatpush.msra.mxu0 %v240
        %299 = vmatpush.msra.mxu0 %v238
        %300 = vmatpush.msra.mxu0 %v236
        %301 = vmatpush.msra.mxu0 %v234
        %302 = vmatpush.msra.mxu0 %v232
        %303 = vmatpush.msra.mxu0 %v230
        %304 = vmatpush.msra.mxu0 %v228
        %305 = vmatpush.msra.mxu0 %v226
        %306 = vmatpush.msra.mxu0 %v224
        %307 = vmatpush.msra.mxu0 %v222
        %308 = vmatpush.msra.mxu0 %v220
        %309 = vmatmul.f32.gmra.mxu0 %v289
        %v310 = vpop.f32.mrf.mxu0
        %v311 = vadd.f32 0.0, %v310
        %312 = vdwg.mxu0
        %313 = vmatpush.msra.mxu0 %v282
        %314 = vmatpush.msra.mxu0 %v280
        %315 = vmatpush.msra.mxu0 %v278
        %316 = vmatpush.msra.mxu0 %v276
        %317 = vmatpush.msra.mxu0 %v274
        %318 = vmatpush.msra.mxu0 %v272
        %319 = vmatpush.msra.mxu0 %v270
        %320 = vmatpush.msra.mxu0 %v268
        %321 = vmatpush.msra.mxu0 %v266
        %322 = vmatpush.msra.mxu0 %v264
        %323 = vmatpush.msra.mxu0 %v262
        %324 = vmatpush.msra.mxu0 %v260
        %325 = vmatpush.msra.mxu0 %v258
        %326 = vmatpush.msra.mxu0 %v256
        %327 = vmatpush.msra.mxu0 %v254
        %328 = vmatpush.msra.mxu0 %v252
        %329 = vmatmul.f32.gmra.mxu0 %v290
        %v330 = vpop.f32.mrf.mxu0
        %v331 = vadd.f32 %v311, %v330
        %332 = vdwg.mxu0
        %333 = vmatpush.msra.mxu0 %v251
        %334 = vmatpush.msra.mxu0 %v249
        %335 = vmatpush.msra.mxu0 %v247
        %336 = vmatpush.msra.mxu0 %v245
        %337 = vmatpush.msra.mxu0 %v243
        %338 = vmatpush.msra.mxu0 %v241
        %339 = vmatpush.msra.mxu0 %v239
        %340 = vmatpush.msra.mxu0 %v237
        %341 = vmatpush.msra.mxu0 %v235
        %342 = vmatpush.msra.mxu0 %v233
        %343 = vmatpush.msra.mxu0 %v231
        %344 = vmatpush.msra.mxu0 %v229
        %345 = vmatpush.msra.mxu0 %v227
        %346 = vmatpush.msra.mxu0 %v225
        %347 = vmatpush.msra.mxu0 %v223
        %348 = vmatpush.msra.mxu0 %v221
        %349 = vmatmul.f32.gmra.mxu0 %v289
        %v350 = vpop.f32.mrf.mxu0
        %v351 = vadd.f32 0.0, %v350
        %352 = vdwg.mxu0
        %353 = vmatpush.msra.mxu0 %v283
        %354 = vmatpush.msra.mxu0 %v281
        %355 = vmatpush.msra.mxu0 %v279
        %356 = vmatpush.msra.mxu0 %v277
        %357 = vmatpush.msra.mxu0 %v275
        %358 = vmatpush.msra.mxu0 %v273
        %359 = vmatpush.msra.mxu0 %v271
        %360 = vmatpush.msra.mxu0 %v269
        %361 = vmatpush.msra.mxu0 %v267
        %362 = vmatpush.msra.mxu0 %v265
        %363 = vmatpush.msra.mxu0 %v263
        %364 = vmatpush.msra.mxu0 %v261
        %365 = vmatpush.msra.mxu0 %v259
        %366 = vmatpush.msra.mxu0 %v257
        %367 = vmatpush.msra.mxu0 %v255
        %368 = vmatpush.msra.mxu0 %v253
        %369 = vmatmul.f32.gmra.mxu0 %v290
        %v370 = vpop.f32.mrf.mxu0
        %v371 = vadd.f32 %v351, %v370
        %372 = vdwg.mxu0
        %v373 = vmax.f32 %v331, 0.0
        %v374 = vmax.f32 %v371, 0.0
        %v377 = vrot.slane %v374, 7
        %vm378 = vcmask 1040384
        %v379 = vsel %vm378, %v373, %v377
        %vm380 = vcmask 1041409
        %v381 = vsel %vm380, %v373, %v377
        %v382 = vrot.slane %v381, 1
        %v385 = vlaneseq
        %vm386 = vcmp.ge.s32.totalorder %v385, 0
        %vm387 = vcmp.lt.s32.totalorder %v385, 256
        %vm388 = vmand %vm386, %vm387
        %389 = vst.msk [vmem:[%s210] sm:$0x3] %vm388, %v379
        %390 = vst.msk [vmem:[%s210 + $0x2] sm:$0x3] %vm388, %v382
        %s391 = sand.u32 %s89, 1
        %s392 = sand.u32 %s89, 1
        %s393 = smul.addr %s392, 4
        %s394 = scalar_lea.vmem [#allocation3], %s393
        // Predicated region
        $region63: #{head_dnn.1} parent=57 // pred_check
          %p395 = pneg %p99
        $region64: #{head_dnn.1} parent=57 // pred_check_branch
          %397 = sbr.rel (%p395) target = $region66
        $region65: #{head_dnn.1} parent=57 // pred_region
          %s398 = smul.u32 2, %s18
          %s399 = smul.addr %s17, 2
          %s400 = smul.addr %s398, 8
          %s401 = sadd.s32 %s399, %s400
          %s402 = scalar_lea.vmem %s2, %s401
          // Predicated region
          $region67: #{head_dnn.1} parent=65 // pred_check
            _
          $region68: #{head_dnn.1} parent=65 // pred_check_branch
            %404 = sbr.rel (0) target = $region70
          $region69: #{head_dnn.1} parent=65 // pred_region
            // Predicated region
            $region71: #{head_dnn.1} parent=69 // pred_check
              _
            $region72: #{head_dnn.1} parent=69 // pred_check_branch
              %406 = sbr.rel target = $region74
            $region73: #{head_dnn.1} parent=69 // pred_region
              // Predicated region
              $region86: #{head_dnn.1} parent=73 // pred_check
                _
              $region87: #{head_dnn.1} parent=73 // pred_check_branch
                %424 = sbr.rel (0) target = $region89
              $region88: #{head_dnn.1} parent=73 // pred_region
                %s426 = ssub.s32 4, 1
                loop: start=0, step=1, limit=1
                $region90: #{head_dnn.1} parent=88 // loop_pre_header
                  _
                $region91: #{head_dnn.1} parent=88 // loop_header
                  %s428 = sphi 0, %s432
                  %p429 = scmp.ge.s32.totalorder %s428, 1
                  %s433 = sphi %s394, %s394
                  %s434 = sphi %s402, %s402
                $region92: #{head_dnn.1} parent=88 // loop_header_branch
                  %431 = sbr.rel (%p429) target = $region96
                $region93: #{head_dnn.1} parent=88 // loop_body
                  %v435 = vld [vmem:[%s433] sm:%s426]
                  %436 = vst [vmem:[%s434] sm:%s426] %v435
                  %v437 = vld [vmem:[%s433 + $0x2] sm:%s426]
                  %438 = vst [vmem:[%s434 + $0x8] sm:%s426] %v437
                $region94: #{head_dnn.1} parent=88 // loop_footer
                  %s432 = sadd.s32 1, %s428
                $region95: #{head_dnn.1} parent=88 // loop_footer_branch
                  %427 = sbr.rel target = $region91
                $region96: #{head_dnn.1} parent=88 // loop_exit
                  _
              $region89: #{head_dnn.1} parent=73 // pred_fallthru
                _
            $region74: #{head_dnn.1} parent=69 // pred_fallthru
              _
            // Predicated region
            $region75: #{head_dnn.1} parent=69 // pred_check
              _
            $region76: #{head_dnn.1} parent=69 // pred_check_branch
              %408 = sbr.rel (0) target = $region78
            $region77: #{head_dnn.1} parent=69 // pred_region
              %s410 = ssub.s32 4, 1
              loop: start=0, step=1, limit=1
              $region79: #{head_dnn.1} parent=77 // loop_pre_header
                _
              $region80: #{head_dnn.1} parent=77 // loop_header
                %s412 = sphi 0, %s416
                %p413 = scmp.ge.s32.totalorder %s412, 1
                %s417 = sphi %s394, %s394
                %s418 = sphi %s402, %s402
              $region81: #{head_dnn.1} parent=77 // loop_header_branch
                %415 = sbr.rel (%p413) target = $region85
              $region82: #{head_dnn.1} parent=77 // loop_body
                %v419 = vld [vmem:[%s417] sm:%s410]
                %420 = vst [vmem:[%s418] sm:%s410] %v419
                %v421 = vld [vmem:[%s417 + $0x2] sm:%s410]
                %422 = vst [vmem:[%s418 + $0x8] sm:%s410] %v421
              $region83: #{head_dnn.1} parent=77 // loop_footer
                %s416 = sadd.s32 1, %s412
              $region84: #{head_dnn.1} parent=77 // loop_footer_branch
                %411 = sbr.rel target = $region80
              $region85: #{head_dnn.1} parent=77 // loop_exit
                _
            $region78: #{head_dnn.1} parent=69 // pred_fallthru
              _
          $region70: #{head_dnn.1} parent=65 // pred_fallthru
            _
          %439 = vnop
        $region66: #{head_dnn.1} parent=57 // pred_fallthru
          _
      $region58: #{head_dnn.1} parent=5 // pred_fallthru
        _
      %p440 = scmp.le.s32.totalorder 2, %s8
      // Predicated region
      $region97: #{head_dnn.1} parent=5 // pred_check
        %p441 = pneg %p440
      $region98: #{head_dnn.1} parent=5 // pred_check_branch
        %443 = sbr.rel (%p441) target = $region100
      $region99: #{head_dnn.1} parent=5 // pred_region
        %s444 = ssub.s32 %s8, 2
        // Predicated region
        $region101: #{head_dnn.1} parent=99 // pred_check
          %p445 = pneg %p105
        $region102: #{head_dnn.1} parent=99 // pred_check_branch
          %447 = sbr.rel (%p445) target = $region104
        $region103: #{head_dnn.1} parent=99 // pred_region
          %s448 = sand.u32 %s90, 1
          %s449 = sand.u32 %s90, 1
          %s450 = smul.addr %s449, 4
          %s451 = scalar_lea.vmem [#allocation3], %s450
        $region104: #{head_dnn.1} parent=99 // pred_fallthru
          _
      $region100: #{head_dnn.1} parent=5 // pred_fallthru
        _
    $region6: #{head_dnn.1} parent=1 // loop_footer
      %s12 = sadd.s32 1, %s8
    $region7: #{head_dnn.1} parent=1 // loop_footer_branch
      %7 = sbr.rel target = $region3
    $region8: #{head_dnn.1} parent=1 // loop_exit
      _

</llo_original>
